<compile_context>
chip_gen: v7x
topology: tpu7x:2x2x1
jax: 0.10.0
libtpu: 0.0.40
codegen_flags: <defaults>
</compile_context>

<pallas_src>
import functools

import jax
import jax.numpy as jnp
from jax.experimental import pallas as pl
from jax.experimental.pallas import tpu as pltpu


# ---------------------------------------------------------------------------
# Kernel helpers
# ---------------------------------------------------------------------------

def _layernorm(h, gamma, beta, eps=1e-5):
    # PyTorch nn.LayerNorm: biased variance, eps inside the sqrt.
    # Single-pass statistics: mean and mean-of-squares are independent XLU
    # reductions; var = E[x^2] - E[x]^2 (clamped at 0 for rounding safety).
    mu = jnp.mean(h, axis=-1, keepdims=True)
    ms = jnp.mean(h * h, axis=-1, keepdims=True)
    var = jnp.maximum(ms - mu * mu, 0.0)
    return (h - mu) * jax.lax.rsqrt(var + eps) * gamma + beta


def _mish(h):
    # mish(x) = x * tanh(softplus(x)) = x - 2x / ((1+e^x)^2 + 1)
    # 1 EUP exp + 1 EUP approx reciprocal (vs exp+log1p+tanh).
    e = jnp.exp(h)
    ep1 = 1.0 + e
    # Clamp so vrcp never receives inf (e.g. if h were huge); reciprocal of the
    # clamp value is ~3e-39, i.e. mish -> h exactly as desired.
    denom = jnp.minimum(ep1 * ep1 + 1.0, jnp.float32(3.0e38))
    return h - 2.0 * h * pl.reciprocal(denom, approx=True)


def _decoder_kernel(x_ref, w1_ref, w2_ref, wf_ref, p_ref, out_ref,
                    *, h1, h2, d_out_pad):
    # x_ref:  (TB, D_in)         bf16
    # w*_ref: bf16 weight mats (wf already lane-padded to d_out_pad)
    # p_ref:  (8, P) f32 packed row vectors:
    #         [b1, g1, be1, b2, g2, be2, bf_pad, zeros]
    # out_ref:(TB, d_out_pad)    f32
    b1 = p_ref[0:1, :h1]
    g1 = p_ref[1:2, :h1]
    be1 = p_ref[2:3, :h1]
    b2 = p_ref[3:4, :h2]
    g2 = p_ref[4:5, :h2]
    be2 = p_ref[5:6, :h2]
    bf = p_ref[6:7, :d_out_pad]

    x = x_ref[...]

    h = jnp.dot(x, w1_ref[...], preferred_element_type=jnp.float32) + b1
    h = _mish(_layernorm(h, g1, be1))

    h = jnp.dot(h.astype(jnp.bfloat16), w2_ref[...],
                preferred_element_type=jnp.float32) + b2
    h = _mish(_layernorm(h, g2, be2))

    out = jnp.dot(h.astype(jnp.bfloat16), wf_ref[...],
                  preferred_element_type=jnp.float32) + bf
    out_ref[...] = out.astype(out_ref.dtype)


# ---------------------------------------------------------------------------
# Wrapper
# ---------------------------------------------------------------------------

def _round_up(n, m):
    return ((n + m - 1) // m) * m


def _cdiv(a, b):
    return -(-a // b)


def transformer_decoder_forward(z, params, cond=None, *, block_b=None):
    """Forward pass of TransformerDecoder (2 hidden layers + final Linear).

    z:    (B, Dz) float array
    cond: optional (B, Dc); concatenated on the feature axis (torch.cat semantics).
    params: (w1, b1, g1, be1, w2, b2, g2, be2, wf, bf)
    """
    if cond is not None:
        z = jnp.concatenate((z, cond), axis=-1)   # layout glue; stays outside kernel

    w1, b1, g1, be1, w2, b2, g2, be2, wf, bf = [p.astype(jnp.float32) for p in params]
    B, d_in = z.shape
    h1 = w1.shape[1]
    h2 = w2.shape[1]
    d_out = wf.shape[1]
    assert w1.shape[0] == d_in, "first Linear in_features must match z (+cond) width"

    # --- output lane-padding to 128 (unmasked stores, wide writeback DMA) ------
    d_out_pad = _round_up(d_out, 128)
    wf_pad = jnp.pad(wf, ((0, 0), (0, d_out_pad - d_out)))
    bf_pad = jnp.pad(bf, (0, d_out_pad - d_out))

    # --- pack all row vectors into a single (8, P) broadcast operand -----------
    p_width = max(h1, h2, d_out_pad)

    def _row(v):
        return jnp.pad(v, (0, p_width - v.shape[0]))

    packed = jnp.stack(
        [_row(b1), _row(g1), _row(be1),
         _row(b2), _row(g2), _row(be2),
         _row(bf_pad), jnp.zeros((p_width,), jnp.float32)], axis=0)   # (8, P) f32

    # --- bf16 matmul operands (MXU-native on v5e/v6e/v7x); f32 accumulate ------
    w1_b = w1.astype(jnp.bfloat16)
    w2_b = w2.astype(jnp.bfloat16)
    wf_b = wf_pad.astype(jnp.bfloat16)
    z_b = z.astype(jnp.bfloat16)

    # --- batch tile: pad-aware, <= ~2048 rows, >= 2 grid steps when B is big ---
    if block_b is None:
        n_steps = _cdiv(B, 2048)
        if B >= 64:
            n_steps = max(n_steps, 2)   # shard batch across both TCs on v7x
        block_b = _round_up(_cdiv(B, n_steps), 8)
    b_pad = _round_up(B, block_b)
    if b_pad != B:
        z_b = jnp.pad(z_b, ((0, b_pad - B), (0, 0)))

    grid = (b_pad // block_b,)

    def _full(shape):
        return pl.BlockSpec(shape, lambda i: (0, 0))

    out = pl.pallas_call(
        functools.partial(_decoder_kernel, h1=h1, h2=h2, d_out_pad=d_out_pad),
        out_shape=jax.ShapeDtypeStruct((b_pad, d_out_pad), jnp.float32),
        grid=grid,
        in_specs=[
            pl.BlockSpec((block_b, d_in), lambda i: (i, 0)),
            _full((d_in, h1)),
            _full((h1, h2)),
            _full((h2, d_out_pad)),
            _full((8, p_width)),
        ],
        out_specs=pl.BlockSpec((block_b, d_out_pad), lambda i: (i, 0)),
        compiler_params=pltpu.CompilerParams(
            dimension_semantics=("parallel",)),   # shards batch tiles across TCs
    )(z_b, w1_b, w2_b, wf_b, packed)

    return out[:B, :d_out]


# ---------------------------------------------------------------------------
# Pure-JAX reference (mirrors the PyTorch forward, f32 throughout)
# ---------------------------------------------------------------------------

def _reference(z, params, cond=None):
    if cond is not None:
        z = jnp.concatenate((z, cond), axis=-1)
    w1, b1, g1, be1, w2, b2, g2, be2, wf, bf = params

    def ln(h, g, b):
        mu = h.mean(-1, keepdims=True)
        var = ((h - mu) ** 2).mean(-1, keepdims=True)
        return (h - mu) / jnp.sqrt(var + 1e-5) * g + b

    def mish(h):
        return h * jnp.tanh(jax.nn.softplus(h))

    h = mish(ln(z @ w1 + b1, g1, be1))
    h = mish(ln(h @ w2 + b2, g2, be2))
    return h @ wf + bf


# ---------------------------------------------------------------------------
# Demo / self-check
# ---------------------------------------------------------------------------

if __name__ == "__main__":
    key = jax.random.PRNGKey(0)

    # Module config mirroring the PyTorch defaults (latent 16, cond 36,
    # mid_dims=[128, 128], output 36); small batch for the demo.
    B = 8
    latent_dim, cond_dim, output_dim = 16, 36, 36
    mid = [128, 128]
    d_in = latent_dim + cond_dim       # forward concatenates z and cond

    ks = jax.random.split(key, 12)
    scale = 0.1
    w1 = jax.random.normal(ks[0], (d_in, mid[0]), jnp.float32) * scale
    b1 = jax.random.normal(ks[1], (mid[0],), jnp.float32) * scale
    g1 = 1.0 + jax.random.normal(ks[2], (mid[0],), jnp.float32) * scale
    be1 = jax.random.normal(ks[3], (mid[0],), jnp.float32) * scale
    w2 = jax.random.normal(ks[4], (mid[0], mid[1]), jnp.float32) * scale
    b2 = jax.random.normal(ks[5], (mid[1],), jnp.float32) * scale
    g2 = 1.0 + jax.random.normal(ks[6], (mid[1],), jnp.float32) * scale
    be2 = jax.random.normal(ks[7], (mid[1],), jnp.float32) * scale
    wf = jax.random.normal(ks[8], (mid[1], output_dim), jnp.float32) * scale
    bf = jax.random.normal(ks[9], (output_dim,), jnp.float32) * scale
    params = (w1, b1, g1, be1, w2, b2, g2, be2, wf, bf)

    z = jax.random.normal(ks[10], (B, latent_dim), jnp.float32)
    cond = jax.random.normal(ks[11], (B, cond_dim), jnp.float32)

    out = transformer_decoder_forward(z, params, cond=cond)
    out = jax.block_until_ready(out)

    ref = _reference(z, params, cond=cond)
    assert out.shape == (B, output_dim)
    # bf16 MXU operands + approx-reciprocal mish => relaxed tolerance vs f32 ref.
    assert jnp.allclose(out, ref, atol=3e-2, rtol=3e-2), (
        float(jnp.max(jnp.abs(out - ref))))

    # TODO(synk): kernel is specialized to the default 2-hidden-layer topology;
    # arbitrary-depth mid_dims would need a generated kernel or an in-kernel layer loop.
    print("KERNEL_OK")
</pallas_src>

<mosaic_0001>
module attributes {stable_mosaic.version = 11 : i64} {
  func.func @_decoder_kernel(%arg0: i32, %arg1: memref<8x52xbf16, #tpu.memory_space<vmem>>, %arg2: memref<52x128xbf16, #tpu.memory_space<vmem>>, %arg3: memref<128x128xbf16, #tpu.memory_space<vmem>>, %arg4: memref<128x128xbf16, #tpu.memory_space<vmem>>, %arg5: memref<8x128xf32, #tpu.memory_space<vmem>>, %arg6: memref<8x128xf32, #tpu.memory_space<vmem>>) attributes {dimension_semantics = [#tpu.dimension_semantics<parallel>], iteration_bounds = array<i64: 1>, scalar_prefetch = 0 : i64, scratch_operands = 0 : i64, tpu.core_type = #tpu.core_type<tc>, window_params = [{transform_indices = @transform_0, window_bounds = array<i64: 8, 52>}, {pipeline_mode = #tpu.pipeline_mode<synchronous>, transform_indices = @transform_1, window_bounds = array<i64: 52, 128>}, {pipeline_mode = #tpu.pipeline_mode<synchronous>, transform_indices = @transform_2, window_bounds = array<i64: 128, 128>}, {pipeline_mode = #tpu.pipeline_mode<synchronous>, transform_indices = @transform_3, window_bounds = array<i64: 128, 128>}, {pipeline_mode = #tpu.pipeline_mode<synchronous>, transform_indices = @transform_4, window_bounds = array<i64: 8, 128>}, {transform_indices = @transform_5, window_bounds = array<i64: 8, 128>}]} {
    %c0 = arith.constant 0 : index
    %c0_0 = arith.constant 0 : index
    %0 = vector.load %arg5[%c0, %c0_0] : memref<8x128xf32, #tpu.memory_space<vmem>>, vector<1x128xf32>
    %c1 = arith.constant 1 : index
    %c0_1 = arith.constant 0 : index
    %1 = vector.load %arg5[%c1, %c0_1] : memref<8x128xf32, #tpu.memory_space<vmem>>, vector<1x128xf32>
    %c2 = arith.constant 2 : index
    %c0_2 = arith.constant 0 : index
    %2 = vector.load %arg5[%c2, %c0_2] : memref<8x128xf32, #tpu.memory_space<vmem>>, vector<1x128xf32>
    %c3 = arith.constant 3 : index
    %c0_3 = arith.constant 0 : index
    %3 = vector.load %arg5[%c3, %c0_3] : memref<8x128xf32, #tpu.memory_space<vmem>>, vector<1x128xf32>
    %c4 = arith.constant 4 : index
    %c0_4 = arith.constant 0 : index
    %4 = vector.load %arg5[%c4, %c0_4] : memref<8x128xf32, #tpu.memory_space<vmem>>, vector<1x128xf32>
    %c5 = arith.constant 5 : index
    %c0_5 = arith.constant 0 : index
    %5 = vector.load %arg5[%c5, %c0_5] : memref<8x128xf32, #tpu.memory_space<vmem>>, vector<1x128xf32>
    %c6 = arith.constant 6 : index
    %c0_6 = arith.constant 0 : index
    %6 = vector.load %arg5[%c6, %c0_6] : memref<8x128xf32, #tpu.memory_space<vmem>>, vector<1x128xf32>
    %c0_7 = arith.constant 0 : index
    %c0_8 = arith.constant 0 : index
    %7 = vector.load %arg1[%c0_7, %c0_8] : memref<8x52xbf16, #tpu.memory_space<vmem>>, vector<8x52xbf16>
    %c0_9 = arith.constant 0 : index
    %c0_10 = arith.constant 0 : index
    %8 = vector.load %arg2[%c0_9, %c0_10] : memref<52x128xbf16, #tpu.memory_space<vmem>>, vector<52x128xbf16>
    %cst = arith.constant dense<0.000000e+00> : vector<8x128xf32>
    %9 = tpu.matmul %7, %8, %cst {dimension_numbers = #tpu.dot_dimension_numbers<[1], [0], [0], [1], [0, 0, 1, 1], [], []>} : vector<8x52xbf16>, vector<52x128xbf16>, vector<8x128xf32> -> vector<8x128xf32>
    %10 = vector.broadcast %0 : vector<1x128xf32> to vector<8x128xf32>
    %11 = arith.addf %9, %10 : vector<8x128xf32>
    %cst_11 = arith.constant dense<0.000000e+00> : vector<8xf32>
    %12 = vector.multi_reduction <add>, %11, %cst_11 [1] : vector<8x128xf32> to vector<8xf32>
    %13 = vector.shape_cast %12 : vector<8xf32> to vector<8x1xf32>
    %cst_12 = arith.constant 1.280000e+02 : f32
    %14 = vector.broadcast %cst_12 : f32 to vector<8x1xf32>
    %15 = arith.divf %13, %14 : vector<8x1xf32>
    %16 = arith.mulf %11, %11 : vector<8x128xf32>
    %cst_13 = arith.constant dense<0.000000e+00> : vector<8xf32>
    %17 = vector.multi_reduction <add>, %16, %cst_13 [1] : vector<8x128xf32> to vector<8xf32>
    %18 = vector.shape_cast %17 : vector<8xf32> to vector<8x1xf32>
    %cst_14 = arith.constant 1.280000e+02 : f32
    %19 = vector.broadcast %cst_14 : f32 to vector<8x1xf32>
    %20 = arith.divf %18, %19 : vector<8x1xf32>
    %21 = arith.mulf %15, %15 : vector<8x1xf32>
    %22 = arith.subf %20, %21 : vector<8x1xf32>
    %cst_15 = arith.constant 0.000000e+00 : f32
    %23 = vector.broadcast %cst_15 : f32 to vector<8x1xf32>
    %24 = arith.maximumf %22, %23 : vector<8x1xf32>
    %25 = vector.broadcast %15 : vector<8x1xf32> to vector<8x128xf32>
    %26 = arith.subf %11, %25 : vector<8x128xf32>
    %cst_16 = arith.constant 9.99999974E-6 : f32
    %27 = vector.broadcast %cst_16 : f32 to vector<8x1xf32>
    %28 = arith.addf %24, %27 : vector<8x1xf32>
    %29 = math.rsqrt %28 : vector<8x1xf32>
    %30 = vector.broadcast %29 : vector<8x1xf32> to vector<8x128xf32>
    %31 = arith.mulf %26, %30 : vector<8x128xf32>
    %32 = vector.broadcast %1 : vector<1x128xf32> to vector<8x128xf32>
    %33 = arith.mulf %31, %32 : vector<8x128xf32>
    %34 = vector.broadcast %2 : vector<1x128xf32> to vector<8x128xf32>
    %35 = arith.addf %33, %34 : vector<8x128xf32>
    %36 = math.exp %35 : vector<8x128xf32>
    %cst_17 = arith.constant 1.000000e+00 : f32
    %37 = vector.broadcast %cst_17 : f32 to vector<8x128xf32>
    %38 = arith.addf %37, %36 : vector<8x128xf32>
    %39 = arith.mulf %38, %38 : vector<8x128xf32>
    %cst_18 = arith.constant 1.000000e+00 : f32
    %40 = vector.broadcast %cst_18 : f32 to vector<8x128xf32>
    %41 = arith.addf %39, %40 : vector<8x128xf32>
    %cst_19 = arith.constant 3.000000e+38 : f32
    %42 = vector.broadcast %cst_19 : f32 to vector<8x128xf32>
    %43 = arith.minimumf %41, %42 : vector<8x128xf32>
    %cst_20 = arith.constant 2.000000e+00 : f32
    %44 = vector.broadcast %cst_20 : f32 to vector<8x128xf32>
    %45 = arith.mulf %44, %35 : vector<8x128xf32>
    %46 = tpu.reciprocal %43 {approx = true} : vector<8x128xf32> -> vector<8x128xf32>
    %47 = arith.mulf %45, %46 : vector<8x128xf32>
    %48 = arith.subf %35, %47 : vector<8x128xf32>
    %49 = arith.truncf %48 : vector<8x128xf32> to vector<8x128xbf16>
    %c0_21 = arith.constant 0 : index
    %c0_22 = arith.constant 0 : index
    %50 = vector.load %arg3[%c0_21, %c0_22] : memref<128x128xbf16, #tpu.memory_space<vmem>>, vector<128x128xbf16>
    %cst_23 = arith.constant dense<0.000000e+00> : vector<8x128xf32>
    %51 = tpu.matmul %49, %50, %cst_23 {dimension_numbers = #tpu.dot_dimension_numbers<[1], [0], [0], [1], [0, 0, 1, 1], [], []>} : vector<8x128xbf16>, vector<128x128xbf16>, vector<8x128xf32> -> vector<8x128xf32>
    %52 = vector.broadcast %3 : vector<1x128xf32> to vector<8x128xf32>
    %53 = arith.addf %51, %52 : vector<8x128xf32>
    %cst_24 = arith.constant dense<0.000000e+00> : vector<8xf32>
    %54 = vector.multi_reduction <add>, %53, %cst_24 [1] : vector<8x128xf32> to vector<8xf32>
    %55 = vector.shape_cast %54 : vector<8xf32> to vector<8x1xf32>
    %cst_25 = arith.constant 1.280000e+02 : f32
    %56 = vector.broadcast %cst_25 : f32 to vector<8x1xf32>
    %57 = arith.divf %55, %56 : vector<8x1xf32>
    %58 = arith.mulf %53, %53 : vector<8x128xf32>
    %cst_26 = arith.constant dense<0.000000e+00> : vector<8xf32>
    %59 = vector.multi_reduction <add>, %58, %cst_26 [1] : vector<8x128xf32> to vector<8xf32>
    %60 = vector.shape_cast %59 : vector<8xf32> to vector<8x1xf32>
    %cst_27 = arith.constant 1.280000e+02 : f32
    %61 = vector.broadcast %cst_27 : f32 to vector<8x1xf32>
    %62 = arith.divf %60, %61 : vector<8x1xf32>
    %63 = arith.mulf %57, %57 : vector<8x1xf32>
    %64 = arith.subf %62, %63 : vector<8x1xf32>
    %cst_28 = arith.constant 0.000000e+00 : f32
    %65 = vector.broadcast %cst_28 : f32 to vector<8x1xf32>
    %66 = arith.maximumf %64, %65 : vector<8x1xf32>
    %67 = vector.broadcast %57 : vector<8x1xf32> to vector<8x128xf32>
    %68 = arith.subf %53, %67 : vector<8x128xf32>
    %cst_29 = arith.constant 9.99999974E-6 : f32
    %69 = vector.broadcast %cst_29 : f32 to vector<8x1xf32>
    %70 = arith.addf %66, %69 : vector<8x1xf32>
    %71 = math.rsqrt %70 : vector<8x1xf32>
    %72 = vector.broadcast %71 : vector<8x1xf32> to vector<8x128xf32>
    %73 = arith.mulf %68, %72 : vector<8x128xf32>
    %74 = vector.broadcast %4 : vector<1x128xf32> to vector<8x128xf32>
    %75 = arith.mulf %73, %74 : vector<8x128xf32>
    %76 = vector.broadcast %5 : vector<1x128xf32> to vector<8x128xf32>
    %77 = arith.addf %75, %76 : vector<8x128xf32>
    %78 = math.exp %77 : vector<8x128xf32>
    %cst_30 = arith.constant 1.000000e+00 : f32
    %79 = vector.broadcast %cst_30 : f32 to vector<8x128xf32>
    %80 = arith.addf %79, %78 : vector<8x128xf32>
    %81 = arith.mulf %80, %80 : vector<8x128xf32>
    %cst_31 = arith.constant 1.000000e+00 : f32
    %82 = vector.broadcast %cst_31 : f32 to vector<8x128xf32>
    %83 = arith.addf %81, %82 : vector<8x128xf32>
    %cst_32 = arith.constant 3.000000e+38 : f32
    %84 = vector.broadcast %cst_32 : f32 to vector<8x128xf32>
    %85 = arith.minimumf %83, %84 : vector<8x128xf32>
    %cst_33 = arith.constant 2.000000e+00 : f32
    %86 = vector.broadcast %cst_33 : f32 to vector<8x128xf32>
    %87 = arith.mulf %86, %77 : vector<8x128xf32>
    %88 = tpu.reciprocal %85 {approx = true} : vector<8x128xf32> -> vector<8x128xf32>
    %89 = arith.mulf %87, %88 : vector<8x128xf32>
    %90 = arith.subf %77, %89 : vector<8x128xf32>
    %91 = arith.truncf %90 : vector<8x128xf32> to vector<8x128xbf16>
    %c0_34 = arith.constant 0 : index
    %c0_35 = arith.constant 0 : index
    %92 = vector.load %arg4[%c0_34, %c0_35] : memref<128x128xbf16, #tpu.memory_space<vmem>>, vector<128x128xbf16>
    %cst_36 = arith.constant dense<0.000000e+00> : vector<8x128xf32>
    %93 = tpu.matmul %91, %92, %cst_36 {dimension_numbers = #tpu.dot_dimension_numbers<[1], [0], [0], [1], [0, 0, 1, 1], [], []>} : vector<8x128xbf16>, vector<128x128xbf16>, vector<8x128xf32> -> vector<8x128xf32>
    %94 = vector.broadcast %6 : vector<1x128xf32> to vector<8x128xf32>
    %95 = arith.addf %93, %94 : vector<8x128xf32>
    %c0_37 = arith.constant 0 : index
    %c0_38 = arith.constant 0 : index
    %96 = vector.load %arg6[%c0_37, %c0_38] : memref<8x128xf32, #tpu.memory_space<vmem>>, vector<8x128xf32>
    tpu.vector_store %arg6[%c0_37, %c0_38], %95 {strides = array<i32>} : memref<8x128xf32, #tpu.memory_space<vmem>>, vector<8x128xf32>,
    return
  }
  func.func @transform_0(%arg0: i32) -> (i32, i32) {
    %c0_i32 = arith.constant 0 : i32
    %c0_i32_0 = arith.constant 0 : i32
    return %arg0, %c0_i32 : i32, i32
  }
  func.func @transform_1(%arg0: i32) -> (i32, i32) {
    %c0_i32 = arith.constant 0 : i32
    %c0_i32_0 = arith.constant 0 : i32
    %c0_i32_1 = arith.constant 0 : i32
    return %c0_i32, %c0_i32_0 : i32, i32
  }
  func.func @transform_2(%arg0: i32) -> (i32, i32) {
    %c0_i32 = arith.constant 0 : i32
    %c0_i32_0 = arith.constant 0 : i32
    %c0_i32_1 = arith.constant 0 : i32
    return %c0_i32, %c0_i32_0 : i32, i32
  }
  func.func @transform_3(%arg0: i32) -> (i32, i32) {
    %c0_i32 = arith.constant 0 : i32
    %c0_i32_0 = arith.constant 0 : i32
    %c0_i32_1 = arith.constant 0 : i32
    return %c0_i32, %c0_i32_0 : i32, i32
  }
  func.func @transform_4(%arg0: i32) -> (i32, i32) {
    %c0_i32 = arith.constant 0 : i32
    %c0_i32_0 = arith.constant 0 : i32
    %c0_i32_1 = arith.constant 0 : i32
    return %c0_i32, %c0_i32_0 : i32, i32
  }
  func.func @transform_5(%arg0: i32) -> (i32, i32) {
    %c0_i32 = arith.constant 0 : i32
    %c0_i32_0 = arith.constant 0 : i32
    return %arg0, %c0_i32 : i32, i32
  }
}

</mosaic_0001>

<llo_original>
// kernel: tpu_custom_call.1
$region0: #{tpu_custom_call.1}
  #allocation0 [shape = 'u32[]', space=smem, size = 0x4, offset = 0x4, fixed_abs, tag = 'smem constant byte address 0x4 - core index']
  #allocation1 [shape = 'u32[144,128]{1,0:T(1,128)}', space=vmem, size = 0x12000, scoped, tag = 'internal scratch']
  %s0 = inlined_call_operand.hbm [shape: bf16[8,52], index: 0, kind: input, shape index: {}]
  %s1 = inlined_call_operand.hbm [shape: bf16[52,128], index: 1, kind: input, shape index: {}]
  %s2 = inlined_call_operand.hbm [shape: bf16[128,128], index: 2, kind: input, shape index: {}]
  %s3 = inlined_call_operand.hbm [shape: bf16[128,128], index: 3, kind: input, shape index: {}]
  %s4 = inlined_call_operand.vmem [shape: f32[8,128], index: 4, kind: input, shape index: {}]
  %s5 = inlined_call_operand.hbm [shape: f32[8,128], index: 5, kind: output, shape index: {}]
  %s6 = sld [smem:[#allocation0]]
  $region46: #{tpu_custom_call.1} parent=0
    _
  %s8 = ssub.s32 1, %s6
  %s9 = scalar_select 0, %s8, %s6
  $region1: #{tpu_custom_call.1} parent=0
    #allocation2 [shape = 'u8[2048]{0}', space=vmem, size = 0x800, scoped, tag = 'input window, operand 0, single buffered']
    #allocation3 [shape = 's32[1]{0}', space=sflag, size = 0x4, scoped, tag = 'scoped memory for tpu_custom_call.1']
    #allocation4 [shape = 's32[1]{0}', space=sflag, size = 0x4, scoped, tag = 'scoped memory for tpu_custom_call.1']
    #allocation5 [shape = 'u8[14336]{0}', space=vmem, size = 0x3800, scoped, tag = 'input window, operand 1, single buffered']
    #allocation6 [shape = 's32[1]{0}', space=sflag, size = 0x4, scoped, tag = 'scoped memory for tpu_custom_call.1']
    #allocation7 [shape = 'u8[32768]{0}', space=vmem, size = 0x8000, scoped, tag = 'input window, operand 2, single buffered']
    #allocation8 [shape = 'u8[32768]{0}', space=vmem, size = 0x8000, scoped, tag = 'input window, operand 3, single buffered']
    #allocation9 [shape = 's32[1]{0}', space=sflag, size = 0x4, scoped, tag = 'scoped memory for tpu_custom_call.1']
    #allocation10 [shape = 'u8[4096]{0}', space=vmem, size = 0x1000, scoped, tag = 'output window, operand 0, single buffered']
    %10 = vsyncpa [#allocation3], 0
    %11 = vsyncpa [#allocation6], 0
    %12 = vsyncpa [#allocation9], 0
    %13 = vsyncpa [#allocation4], 0
    // Predicated region
    $region2: #{tpu_custom_call.1} parent=1 // pred_check
      _
    $region3: #{tpu_custom_call.1} parent=1 // pred_check_branch
      %15 = sbr.rel (0) target = $region5
    $region4: #{tpu_custom_call.1} parent=1 // pred_region
      %s17 = ssub.s32 64, 64
      %18 = vsyncadd [#allocation3], %s17
      %s20 = sshll.u32 [#allocation2], 4
      %s21 = int_to_ptr.vmem [resolvable:$true] %s20
      %23 = dma.hbm_to_vmem [thread:$0]  %s0, 64, %s21, [#allocation3]
    $region5: #{tpu_custom_call.1} parent=1 // pred_fallthru
      _
    // Predicated region
    $region6: #{tpu_custom_call.1} parent=1 // pred_check
      _
    $region7: #{tpu_custom_call.1} parent=1 // pred_check_branch
      %25 = sbr.rel (0) target = $region9
    $region8: #{tpu_custom_call.1} parent=1 // pred_region
      %s27 = ssub.s32 448, 448
      %28 = vsyncadd [#allocation6], %s27
      %s29 = sshll.u32 [#allocation5], 4
      %s30 = int_to_ptr.vmem [resolvable:$true] %s29
      %35 = dma.hbm_to_vmem [thread:$0]  %s1, 448, %s30, [#allocation6], 64, 64, 4
    $region9: #{tpu_custom_call.1} parent=1 // pred_fallthru
      _
    // Predicated region
    $region10: #{tpu_custom_call.1} parent=1 // pred_check
      _
    $region11: #{tpu_custom_call.1} parent=1 // pred_check_branch
      %37 = sbr.rel (0) target = $region13
    $region12: #{tpu_custom_call.1} parent=1 // pred_region
      %s39 = ssub.s32 1024, 1024
      %40 = vsyncadd [#allocation6], %s39
      %s41 = sshll.u32 [#allocation7], 4
      %s42 = int_to_ptr.vmem [resolvable:$true] %s41
      %47 = dma.hbm_to_vmem [thread:$0]  %s2, 1024, %s42, [#allocation6], 64, 64, 4
    $region13: #{tpu_custom_call.1} parent=1 // pred_fallthru
      _
    // Predicated region
    $region14: #{tpu_custom_call.1} parent=1 // pred_check
      _
    $region15: #{tpu_custom_call.1} parent=1 // pred_check_branch
      %49 = sbr.rel (0) target = $region17
    $region16: #{tpu_custom_call.1} parent=1 // pred_region
      %s51 = ssub.s32 1024, 1024
      %52 = vsyncadd [#allocation9], %s51
      %s53 = sshll.u32 [#allocation8], 4
      %s54 = int_to_ptr.vmem [resolvable:$true] %s53
      %59 = dma.hbm_to_vmem [thread:$0]  %s3, 1024, %s54, [#allocation9], 64, 64, 4
    $region17: #{tpu_custom_call.1} parent=1 // pred_fallthru
      _
    // Predicated region
    $region18: #{tpu_custom_call.1} parent=1 // pred_check
      _
    $region19: #{tpu_custom_call.1} parent=1 // pred_check_branch
      %61 = sbr.rel (0) target = $region21
    $region20: #{tpu_custom_call.1} parent=1 // pred_region
      _
    $region21: #{tpu_custom_call.1} parent=1 // pred_fallthru
      _
    // Predicated region
    $region22: #{tpu_custom_call.1} parent=1 // pred_check
      _
    $region23: #{tpu_custom_call.1} parent=1 // pred_check_branch
      %63 = sbr.rel (0) target = $region25
    $region24: #{tpu_custom_call.1} parent=1 // pred_region
      %64 = dma.done [#allocation3], 64
    $region25: #{tpu_custom_call.1} parent=1 // pred_fallthru
      _
    // Predicated region
    $region26: #{tpu_custom_call.1} parent=1 // pred_check
      _
    $region27: #{tpu_custom_call.1} parent=1 // pred_check_branch
      %66 = sbr.rel (0) target = $region29
    $region28: #{tpu_custom_call.1} parent=1 // pred_region
      %67 = dma.done [#allocation6], 448
    $region29: #{tpu_custom_call.1} parent=1 // pred_fallthru
      _
    // Predicated region
    $region30: #{tpu_custom_call.1} parent=1 // pred_check
      _
    $region31: #{tpu_custom_call.1} parent=1 // pred_check_branch
      %69 = sbr.rel (0) target = $region33
    $region32: #{tpu_custom_call.1} parent=1 // pred_region
      %70 = dma.done [#allocation6], 1024
    $region33: #{tpu_custom_call.1} parent=1 // pred_fallthru
      _
    // Predicated region
    $region34: #{tpu_custom_call.1} parent=1 // pred_check
      _
    $region35: #{tpu_custom_call.1} parent=1 // pred_check_branch
      %72 = sbr.rel (0) target = $region37
    $region36: #{tpu_custom_call.1} parent=1 // pred_region
      %73 = dma.done [#allocation9], 1024
    $region37: #{tpu_custom_call.1} parent=1 // pred_fallthru
      _
    %v75 = vld [vmem:[%s4] sm:$0x1]
    %v76 = vld [vmem:[%s4 + $0x1] sm:$0x1]
    %v77 = vld [vmem:[%s4 + $0x2] sm:$0x1]
    %v78 = vld [vmem:[%s4 + $0x3] sm:$0x1]
    %v79 = vld [vmem:[%s4 + $0x4] sm:$0x1]
    %v80 = vld [vmem:[%s4 + $0x5] sm:$0x1]
    %v81 = vld [vmem:[%s4 + $0x6] sm:$0x1]
    %v82 = vld [vmem:[#allocation2] sm:$0xf]
    %v83 = vld [vmem:[#allocation5] sm:$0xf]
    %v84 = vld [vmem:[#allocation5 + $0x4] sm:$0xf]
    %v85 = vld [vmem:[#allocation5 + $0x8] sm:$0xf]
    %v86 = vld [vmem:[#allocation5 + $0xc] sm:$0xf]
    %v87 = vld [vmem:[#allocation5 + $0x10] sm:$0xf]
    %v88 = vld [vmem:[#allocation5 + $0x14] sm:$0xf]
    %v89 = vld [vmem:[#allocation5 + $0x18] sm:$0x3]
    %v90 = vlaneseq
    %v91 = vshrl.u32 %v90, 7
    %v92 = vsub.s32 0, %v91
    %v93 = vrot.slane %v75, %v92
    %v101 = vunpack.c.l.b16 %v83
    %v102 = vunpack.c.l.b16 %v84
    %v103 = vunpack.c.l.b16 %v85
    %v104 = vunpack.c.l.b16 %v86
    %v105 = vunpack.c.l.b16 %v87
    %v106 = vunpack.c.l.b16 %v88
    %v107 = vunpack.c.l.b16 %v89
    %v108 = vpack.c.b16 %v102, %v101
    %v109 = vpack.c.b16 %v104, %v103
    %v110 = vpack.c.b16 %v106, %v105
    %v111 = vpack.c.b16 %v107, %v107
    %vm115 = vcmask 424960
    %v117 = vsel %vm115, %v82, 0
    %vm119 = vcmask 1041408
    %v121 = vsel %vm119, %v111, 0
    %123 = vmatprep.subr.bf16.mxu0 0
    %124 = vmatpush1.bf16.msra.mxu0 %v108
    %125 = vmatprep.subr.bf16.mxu0 0
    %126 = vmatpush1.bf16.msra.mxu0 %v109
    %127 = vmatprep.subr.bf16.mxu0 0
    %128 = vmatpush1.bf16.msra.mxu0 %v110
    %129 = vmatprep.subr.bf16.mxu0 0
    %130 = vmatpush1.bf16.msra.mxu0 %v121
    %131 = vmatprep.subr.bf16.mxu0 0
    %132 = vmatpush1.bf16.msra.mxu0 0
    %133 = vmatprep.subr.bf16.mxu0 0
    %134 = vmatpush1.bf16.msra.mxu0 0
    %135 = vmatprep.subr.bf16.mxu0 0
    %136 = vmatpush1.bf16.msra.mxu0 0
    %137 = vmatprep.subr.bf16.mxu0 0
    %138 = vmatpush1.bf16.msra.mxu0 0
    %139 = vmatprep.subr.bf16.mxu0 0
    %140 = vmatpush1.bf16.msra.mxu0 0
    %141 = vmatprep.subr.bf16.mxu0 0
    %142 = vmatpush1.bf16.msra.mxu0 0
    %143 = vmatprep.subr.bf16.mxu0 0
    %144 = vmatpush1.bf16.msra.mxu0 0
    %145 = vmatprep.subr.bf16.mxu0 0
    %146 = vmatpush1.bf16.msra.mxu0 0
    %147 = vmatprep.subr.bf16.mxu0 0
    %148 = vmatpush1.bf16.msra.mxu0 0
    %149 = vmatprep.subr.bf16.mxu0 0
    %150 = vmatpush1.bf16.msra.mxu0 0
    %151 = vmatprep.subr.bf16.mxu0 0
    %152 = vmatpush1.bf16.msra.mxu0 0
    %153 = vmatprep.subr.bf16.mxu0 0
    %154 = vmatpush1.bf16.msra.mxu0 0
    %155 = vmatprep.mubr.bf16.mxu0 0
    %156 = vmatmul.mubr.bf16.gmra.mrb[0].mxu0 %v117
    %v157 = vpop.f32.mrb[0].mxu0
    %v158 = vadd.f32 %v93, %v157
    %v159 = vpop.f32.mrb[0].mxu0
    %v160 = vpop.f32.mrb[0].mxu0
    %v161 = vpop.f32.mrb[0].mxu0
    %162 = vdwg.mxu0
    %163 = vadd.xlane.f32.xlu0 %v158
    %v164 = vpop.xlane.xlu0 %163
    %v165 = vrcp.pop 128.0
    %v166 = vmul.f32 %v164, %v165
    %v167 = vmul.f32 %v158, %v158
    %168 = vadd.xlane.f32.xlu0 %v167
    %v169 = vpop.xlane.xlu0 %168
    %v170 = vmul.f32 %v169, %v165
    %v171 = vmul.f32 %v166, %v166
    %v172 = vsub.f32 %v170, %v171
    %v173 = vmax.f32 %v172, 0.0
    %v174 = vsub.f32 %v158, %v166
    %v175 = vadd.f32 %v173, 1e-05
    %v176 = vrsqrt.pop %v175
    %v177 = vmul.f32 %v174, %v176
    %v178 = vlaneseq
    %v179 = vshrl.u32 %v178, 7
    %v180 = vsub.s32 0, %v179
    %v181 = vrot.slane %v76, %v180
    %v182 = vmul.f32 %v177, %v181
    %v183 = vlaneseq
    %v184 = vshrl.u32 %v183, 7
    %v185 = vsub.s32 0, %v184
    %v186 = vrot.slane %v77, %v185
    %v187 = vadd.f32 %v182, %v186
    %v188 = vmul.f32 %v187, 1.442695
    %v189 = vpow.pop %v188
    %v190 = vadd.f32 %v189, 1.0
    %v191 = vmul.f32 %v190, %v190
    %v192 = vadd.f32 %v191, 1.0
    %v193 = vmin.f32 %v192, 3e+38
    %v194 = vmul.f32 %v187, 2.0
    %v195 = vrcp.pop %v193
    %v196 = vmul.f32 %v194, %v195
    %v197 = vsub.f32 %v187, %v196
    %v198 = vpack.c.bf16 %v197, %v197
    %v199 = vld [vmem:[#allocation7] sm:$0xf]
    %v200 = vld [vmem:[#allocation7 + $0x4] sm:$0xf]
    %v201 = vld [vmem:[#allocation7 + $0x8] sm:$0xf]
    %v202 = vld [vmem:[#allocation7 + $0xc] sm:$0xf]
    %v203 = vld [vmem:[#allocation7 + $0x10] sm:$0xf]
    %v204 = vld [vmem:[#allocation7 + $0x14] sm:$0xf]
    %v205 = vld [vmem:[#allocation7 + $0x18] sm:$0xf]
    %v206 = vld [vmem:[#allocation7 + $0x1c] sm:$0xf]
    %v207 = vld [vmem:[#allocation7 + $0x20] sm:$0xf]
    %v208 = vld [vmem:[#allocation7 + $0x24] sm:$0xf]
    %v209 = vld [vmem:[#allocation7 + $0x28] sm:$0xf]
    %v210 = vld [vmem:[#allocation7 + $0x2c] sm:$0xf]
    %v211 = vld [vmem:[#allocation7 + $0x30] sm:$0xf]
    %v212 = vld [vmem:[#allocation7 + $0x34] sm:$0xf]
    %v213 = vld [vmem:[#allocation7 + $0x38] sm:$0xf]
    %v214 = vld [vmem:[#allocation7 + $0x3c] sm:$0xf]
    %v215 = vlaneseq
    %v216 = vshrl.u32 %v215, 7
    %v217 = vsub.s32 0, %v216
    %v218 = vrot.slane %v78, %v217
    %v235 = vunpack.c.l.b16 %v199
    %v236 = vunpack.c.l.b16 %v200
    %v237 = vunpack.c.l.b16 %v201
    %v238 = vunpack.c.l.b16 %v202
    %v239 = vunpack.c.l.b16 %v203
    %v240 = vunpack.c.l.b16 %v204
    %v241 = vunpack.c.l.b16 %v205
    %v242 = vunpack.c.l.b16 %v206
    %v243 = vunpack.c.l.b16 %v207
    %v244 = vunpack.c.l.b16 %v208
    %v245 = vunpack.c.l.b16 %v209
    %v246 = vunpack.c.l.b16 %v210
    %v247 = vunpack.c.l.b16 %v211
    %v248 = vunpack.c.l.b16 %v212
    %v249 = vunpack.c.l.b16 %v213
    %v250 = vunpack.c.l.b16 %v214
    %v251 = vpack.c.b16 %v236, %v235
    %v252 = vpack.c.b16 %v238, %v237
    %v253 = vpack.c.b16 %v240, %v239
    %v254 = vpack.c.b16 %v242, %v241
    %v255 = vpack.c.b16 %v244, %v243
    %v256 = vpack.c.b16 %v246, %v245
    %v257 = vpack.c.b16 %v248, %v247
    %v258 = vpack.c.b16 %v250, %v249
    %267 = vmatprep.subr.bf16.mxu0 0
    %268 = vmatpush1.bf16.msra.mxu0 %v251
    %269 = vmatprep.subr.bf16.mxu0 0
    %270 = vmatpush1.bf16.msra.mxu0 %v252
    %271 = vmatprep.subr.bf16.mxu0 0
    %272 = vmatpush1.bf16.msra.mxu0 %v253
    %273 = vmatprep.subr.bf16.mxu0 0
    %274 = vmatpush1.bf16.msra.mxu0 %v254
    %275 = vmatprep.subr.bf16.mxu0 0
    %276 = vmatpush1.bf16.msra.mxu0 %v255
    %277 = vmatprep.subr.bf16.mxu0 0
    %278 = vmatpush1.bf16.msra.mxu0 %v256
    %279 = vmatprep.subr.bf16.mxu0 0
    %280 = vmatpush1.bf16.msra.mxu0 %v257
    %281 = vmatprep.subr.bf16.mxu0 0
    %282 = vmatpush1.bf16.msra.mxu0 %v258
    %283 = vmatprep.subr.bf16.mxu0 0
    %284 = vmatpush1.bf16.msra.mxu0 0
    %285 = vmatprep.subr.bf16.mxu0 0
    %286 = vmatpush1.bf16.msra.mxu0 0
    %287 = vmatprep.subr.bf16.mxu0 0
    %288 = vmatpush1.bf16.msra.mxu0 0
    %289 = vmatprep.subr.bf16.mxu0 0
    %290 = vmatpush1.bf16.msra.mxu0 0
    %291 = vmatprep.subr.bf16.mxu0 0
    %292 = vmatpush1.bf16.msra.mxu0 0
    %293 = vmatprep.subr.bf16.mxu0 0
    %294 = vmatpush1.bf16.msra.mxu0 0
    %295 = vmatprep.subr.bf16.mxu0 0
    %296 = vmatpush1.bf16.msra.mxu0 0
    %297 = vmatprep.subr.bf16.mxu0 0
    %298 = vmatpush1.bf16.msra.mxu0 0
    %299 = vmatprep.mubr.bf16.mxu0 0
    %300 = vmatmul.mubr.bf16.gmra.mrb[0].mxu0 %v198
    %v301 = vpop.f32.mrb[0].mxu0
    %v302 = vadd.f32 %v218, %v301
    %v303 = vpop.f32.mrb[0].mxu0
    %v304 = vpop.f32.mrb[0].mxu0
    %v305 = vpop.f32.mrb[0].mxu0
    %306 = vdwg.mxu0
    %307 = vadd.xlane.f32.xlu0 %v302
    %v308 = vpop.xlane.xlu0 %307
    %v309 = vmul.f32 %v308, %v165
    %v310 = vmul.f32 %v302, %v302
    %311 = vadd.xlane.f32.xlu0 %v310
    %v312 = vpop.xlane.xlu0 %311
    %v313 = vmul.f32 %v312, %v165
    %v314 = vmul.f32 %v309, %v309
    %v315 = vsub.f32 %v313, %v314
    %v316 = vmax.f32 %v315, 0.0
    %v317 = vsub.f32 %v302, %v309
    %v318 = vadd.f32 %v316, 1e-05
    %v319 = vrsqrt.pop %v318
    %v320 = vmul.f32 %v317, %v319
    %v321 = vlaneseq
    %v322 = vshrl.u32 %v321, 7
    %v323 = vsub.s32 0, %v322
    %v324 = vrot.slane %v79, %v323
    %v325 = vmul.f32 %v320, %v324
    %v326 = vlaneseq
    %v327 = vshrl.u32 %v326, 7
    %v328 = vsub.s32 0, %v327
    %v329 = vrot.slane %v80, %v328
    %v330 = vadd.f32 %v325, %v329
    %v331 = vmul.f32 %v330, 1.442695
    %v332 = vpow.pop %v331
    %v333 = vadd.f32 %v332, 1.0
    %v334 = vmul.f32 %v333, %v333
    %v335 = vadd.f32 %v334, 1.0
    %v336 = vmin.f32 %v335, 3e+38
    %v337 = vmul.f32 %v330, 2.0
    %v338 = vrcp.pop %v336
    %v339 = vmul.f32 %v337, %v338
    %v340 = vsub.f32 %v330, %v339
    %v341 = vpack.c.bf16 %v340, %v340
    %v342 = vld [vmem:[#allocation8] sm:$0xf]
    %v343 = vld [vmem:[#allocation8 + $0x4] sm:$0xf]
    %v344 = vld [vmem:[#allocation8 + $0x8] sm:$0xf]
    %v345 = vld [vmem:[#allocation8 + $0xc] sm:$0xf]
    %v346 = vld [vmem:[#allocation8 + $0x10] sm:$0xf]
    %v347 = vld [vmem:[#allocation8 + $0x14] sm:$0xf]
    %v348 = vld [vmem:[#allocation8 + $0x18] sm:$0xf]
    %v349 = vld [vmem:[#allocation8 + $0x1c] sm:$0xf]
    %v350 = vld [vmem:[#allocation8 + $0x20] sm:$0xf]
    %v351 = vld [vmem:[#allocation8 + $0x24] sm:$0xf]
    %v352 = vld [vmem:[#allocation8 + $0x28] sm:$0xf]
    %v353 = vld [vmem:[#allocation8 + $0x2c] sm:$0xf]
    %v354 = vld [vmem:[#allocation8 + $0x30] sm:$0xf]
    %v355 = vld [vmem:[#allocation8 + $0x34] sm:$0xf]
    %v356 = vld [vmem:[#allocation8 + $0x38] sm:$0xf]
    %v357 = vld [vmem:[#allocation8 + $0x3c] sm:$0xf]
    %v358 = vlaneseq
    %v359 = vshrl.u32 %v358, 7
    %v360 = vsub.s32 0, %v359
    %v361 = vrot.slane %v81, %v360
    %v378 = vunpack.c.l.b16 %v342
    %v379 = vunpack.c.l.b16 %v343
    %v380 = vunpack.c.l.b16 %v344
    %v381 = vunpack.c.l.b16 %v345
    %v382 = vunpack.c.l.b16 %v346
    %v383 = vunpack.c.l.b16 %v347
    %v384 = vunpack.c.l.b16 %v348
    %v385 = vunpack.c.l.b16 %v349
    %v386 = vunpack.c.l.b16 %v350
    %v387 = vunpack.c.l.b16 %v351
    %v388 = vunpack.c.l.b16 %v352
    %v389 = vunpack.c.l.b16 %v353
    %v390 = vunpack.c.l.b16 %v354
    %v391 = vunpack.c.l.b16 %v355
    %v392 = vunpack.c.l.b16 %v356
    %v393 = vunpack.c.l.b16 %v357
    %v394 = vpack.c.b16 %v379, %v378
    %v395 = vpack.c.b16 %v381, %v380
    %v396 = vpack.c.b16 %v383, %v382
    %v397 = vpack.c.b16 %v385, %v384
    %v398 = vpack.c.b16 %v387, %v386
    %v399 = vpack.c.b16 %v389, %v388
    %v400 = vpack.c.b16 %v391, %v390
    %v401 = vpack.c.b16 %v393, %v392
    %410 = vmatprep.subr.bf16.mxu0 0
    %411 = vmatpush1.bf16.msra.mxu0 %v394
    %412 = vmatprep.subr.bf16.mxu0 0
    %413 = vmatpush1.bf16.msra.mxu0 %v395
    %414 = vmatprep.subr.bf16.mxu0 0
    %415 = vmatpush1.bf16.msra.mxu0 %v396
    %416 = vmatprep.subr.bf16.mxu0 0
    %417 = vmatpush1.bf16.msra.mxu0 %v397
    %418 = vmatprep.subr.bf16.mxu0 0
    %419 = vmatpush1.bf16.msra.mxu0 %v398
    %420 = vmatprep.subr.bf16.mxu0 0
    %421 = vmatpush1.bf16.msra.mxu0 %v399
    %422 = vmatprep.subr.bf16.mxu0 0
    %423 = vmatpush1.bf16.msra.mxu0 %v400
    %424 = vmatprep.subr.bf16.mxu0 0
    %425 = vmatpush1.bf16.msra.mxu0 %v401
    %426 = vmatprep.subr.bf16.mxu0 0
    %427 = vmatpush1.bf16.msra.mxu0 0
    %428 = vmatprep.subr.bf16.mxu0 0
    %429 = vmatpush1.bf16.msra.mxu0 0
    %430 = vmatprep.subr.bf16.mxu0 0
    %431 = vmatpush1.bf16.msra.mxu0 0
    %432 = vmatprep.subr.bf16.mxu0 0
    %433 = vmatpush1.bf16.msra.mxu0 0
    %434 = vmatprep.subr.bf16.mxu0 0
    %435 = vmatpush1.bf16.msra.mxu0 0
    %436 = vmatprep.subr.bf16.mxu0 0
    %437 = vmatpush1.bf16.msra.mxu0 0
    %438 = vmatprep.subr.bf16.mxu0 0
    %439 = vmatpush1.bf16.msra.mxu0 0
    %440 = vmatprep.subr.bf16.mxu0 0
    %441 = vmatpush1.bf16.msra.mxu0 0
    %442 = vmatprep.mubr.bf16.mxu0 0
    %443 = vmatmul.mubr.bf16.gmra.mrb[0].mxu0 %v341
    %v444 = vpop.f32.mrb[0].mxu0
    %v445 = vadd.f32 %v361, %v444
    %v446 = vpop.f32.mrb[0].mxu0
    %v447 = vpop.f32.mrb[0].mxu0
    %v448 = vpop.f32.mrb[0].mxu0
    %449 = vdwg.mxu0
    %450 = vst [vmem:[#allocation10] sm:$0xff] %v445
    // Predicated region
    $region38: #{tpu_custom_call.1} parent=1 // pred_check
      _
    $region39: #{tpu_custom_call.1} parent=1 // pred_check_branch
      %452 = sbr.rel (0) target = $region41
    $region40: #{tpu_custom_call.1} parent=1 // pred_region
      %s454 = ssub.s32 128, 128
      %455 = vsyncadd [#allocation4], %s454
      %s457 = sshll.u32 [#allocation10], 4
      %s458 = int_to_ptr.vmem [resolvable:$true] %s457
      %460 = dma.vmem_to_hbm [thread:$0]  %s458, 128, %s5, [#allocation4]
    $region41: #{tpu_custom_call.1} parent=1 // pred_fallthru
      _
    // Predicated region
    $region42: #{tpu_custom_call.1} parent=1 // pred_check
      _
    $region43: #{tpu_custom_call.1} parent=1 // pred_check_branch
      %462 = sbr.rel (0) target = $region45
    $region44: #{tpu_custom_call.1} parent=1 // pred_region
      %463 = dma.done [#allocation4], 128
    $region45: #{tpu_custom_call.1} parent=1 // pred_fallthru
      _
    %464 = vsyncpa [#allocation3], 1
    %465 = vsyncpa [#allocation6], 1
    %466 = vsyncpa [#allocation9], 1
    %467 = vsyncpa [#allocation4], 1

</llo_original>
